<compile_context>
chip_gen: v7x
topology: tpu7x:2x2x1
jax: 0.10.0
libtpu: 0.0.40
codegen_flags: <defaults>
</compile_context>

<pallas_src>
import functools

import jax
import jax.numpy as jnp
from jax import lax
from jax.experimental import pallas as pl
from jax.experimental.pallas import tpu as pltpu

NUM_HEADS = 4
_MIB = 1024 * 1024
_VMEM_LIMIT_CACHE = None


def _vmem_limit_bytes():
    """Per-generation VMEM budget: ~75% of reported per-core capacity, capped
    at 96 MiB (v5e/v6e: 128 MiB -> 96 MiB; v7x: 64 MiB/TC -> 48 MiB)."""
    global _VMEM_LIMIT_CACHE
    if _VMEM_LIMIT_CACHE is None:
        try:
            cap = int(pltpu.get_tpu_info().vmem_capacity_bytes)
            _VMEM_LIMIT_CACHE = max(16 * _MIB, min(96 * _MIB, (cap * 3) // 4))
        except Exception:
            _VMEM_LIMIT_CACHE = 32 * _MIB  # conservative, safe on every generation
    return _VMEM_LIMIT_CACHE


def _attention_tile_targets():
    """q/kv tile targets.  Big-VMEM parts (v5e/v6e) get 256/512 per the v6e
    roofline measurements; small budgets (v7x 64 MiB/TC) get 128/256 so
    double-buffered KV tiles + f32 scratch stay well under ~48 MiB."""
    if _vmem_limit_bytes() >= 80 * _MIB:
        return 256, 512
    return 128, 256


def _pick_tile(dim, target):
    return dim if dim <= target else target


# ----------------------------------------------------------------------------
# Tiled GEMM kernels (projections and output projection).
# ----------------------------------------------------------------------------
def _gemm_kernel(x_ref, w_ref, o_ref, acc_ref, *, mxu_dtype):
    @pl.when(pl.program_id(2) == 0)
    def _init():
        acc_ref[...] = jnp.zeros(acc_ref.shape, jnp.float32)

    acc_ref[...] += jnp.dot(x_ref[...].astype(mxu_dtype),
                            w_ref[...].astype(mxu_dtype),
                            preferred_element_type=jnp.float32)

    @pl.when(pl.program_id(2) == pl.num_programs(2) - 1)
    def _store():
        o_ref[...] = acc_ref[...].astype(o_ref.dtype)


def _gemm_bias_kernel(x_ref, w_ref, b_ref, o_ref, acc_ref, *, mxu_dtype):
    @pl.when(pl.program_id(2) == 0)
    def _init():
        acc_ref[...] = jnp.zeros(acc_ref.shape, jnp.float32)

    acc_ref[...] += jnp.dot(x_ref[...].astype(mxu_dtype),
                            w_ref[...].astype(mxu_dtype),
                            preferred_element_type=jnp.float32)

    @pl.when(pl.program_id(2) == pl.num_programs(2) - 1)
    def _store():
        # Bias add stays in f32 regardless of the MXU operand dtype.
        o_ref[...] = (acc_ref[...] + b_ref[...].astype(jnp.float32)
                      ).astype(o_ref.dtype)


def _gemm(x, w, bias=None, *, mxu_dtype, tm=256, tn=256, tk=512):
    """out = x @ w (+ bias).  x: (M, K), w: (K, N), bias: (1, N) or None."""
    M, K = x.shape
    Kw, N = w.shape
    assert K == Kw
    bm, bn, bk = _pick_tile(M, tm), _pick_tile(N, tn), _pick_tile(K, tk)
    assert M % bm == 0 and N % bn == 0 and K % bk == 0, \
        "TODO(synk): pad ragged GEMM dims"
    grid = (M // bm, N // bn, K // bk)

    x_spec = pl.BlockSpec((bm, bk), lambda i, j, k: (i, k))
    w_spec = pl.BlockSpec((bk, bn), lambda i, j, k: (k, j))
    o_spec = pl.BlockSpec((bm, bn), lambda i, j, k: (i, j))

    if bias is not None:
        kernel = functools.partial(_gemm_bias_kernel, mxu_dtype=mxu_dtype)
        in_specs = [x_spec, w_spec, pl.BlockSpec((1, bn), lambda i, j, k: (0, j))]
        args = (x, w, bias)
    else:
        kernel = functools.partial(_gemm_kernel, mxu_dtype=mxu_dtype)
        in_specs = [x_spec, w_spec]
        args = (x, w)

    itemsize = jnp.dtype(x.dtype).itemsize
    cost = pl.CostEstimate(
        flops=int(2 * M * N * K),
        transcendentals=0,
        bytes_accessed=int((M * K + K * N + M * N) * itemsize))

    return pl.pallas_call(
        kernel,
        out_shape=jax.ShapeDtypeStruct((M, N), x.dtype),
        grid_spec=pltpu.PrefetchScalarGridSpec(
            num_scalar_prefetch=0,
            grid=grid,
            in_specs=in_specs,
            out_specs=o_spec,
            scratch_shapes=[pltpu.VMEM((bm, bn), jnp.float32)]),
        compiler_params=pltpu.CompilerParams(
            dimension_semantics=("parallel", "parallel", "arbitrary"),
            vmem_limit_bytes=_vmem_limit_bytes()),
        cost_estimate=cost,
    )(*args)


# ----------------------------------------------------------------------------
# Flash-style causal attention kernel (online softmax, causal tile skipping).
# ----------------------------------------------------------------------------
def _flash_kernel(q_ref, k_ref, v_ref, o_ref, m_scr, l_scr, acc_scr, *,
                  tq, tkv, mxu_dtype):
    qi = pl.program_id(1)
    kj = pl.program_id(2)

    q_start = qi * tq
    q_end = q_start + (tq - 1)
    kv_start = kj * tkv
    kv_end = kv_start + (tkv - 1)

    @pl.when(kj == 0)
    def _init():
        m_scr[...] = jnp.full(m_scr.shape, -jnp.inf, jnp.float32)
        l_scr[...] = jnp.zeros(l_scr.shape, jnp.float32)
        acc_scr[...] = jnp.zeros(acc_scr.shape, jnp.float32)

    def _accumulate(apply_mask):
        q = q_ref[...].astype(mxu_dtype)      # (tq, hd); scale already folded in
        k = k_ref[...].astype(mxu_dtype)      # (tkv, hd)
        # (tq, hd) . (tkv, hd)^T -> (tq, tkv), f32 accumulation on the MXU.
        s = lax.dot_general(q, k, (((1,), (1,)), ((), ())),
                            preferred_element_type=jnp.float32)
        if apply_mask:  # traced only into the diagonal-tile branch
            row = q_start + lax.broadcasted_iota(jnp.int32, (tq, tkv), 0)
            col = kv_start + lax.broadcasted_iota(jnp.int32, (tq, tkv), 1)
            s = jnp.where(col > row, jnp.float32(-1e9), s)
        m_prev = m_scr[...]
        m_new = jnp.maximum(m_prev, jnp.max(s, axis=-1, keepdims=True))
        alpha = jnp.exp(m_prev - m_new)
        p = jnp.exp(s - m_new)
        l_scr[...] = alpha * l_scr[...] + jnp.sum(p, axis=-1, keepdims=True)
        pv = lax.dot_general(p.astype(mxu_dtype), v_ref[...].astype(mxu_dtype),
                             (((1,), (0,)), ((), ())),
                             preferred_element_type=jnp.float32)
        acc_scr[...] = alpha * acc_scr[...] + pv
        m_scr[...] = m_new

    # Fully at/below the diagonal: no masking needed on this tile.
    @pl.when(kv_end <= q_start)
    def _unmasked_tile():
        _accumulate(apply_mask=False)

    # Straddles the diagonal: apply the causal mask on this tile only.
    @pl.when(jnp.logical_and(kv_start <= q_end, kv_end > q_start))
    def _diagonal_tile():
        _accumulate(apply_mask=True)

    # Tiles with kv_start > q_end are fully masked and skipped (causal skip).

    @pl.when(kj == pl.num_programs(2) - 1)
    def _finalize():
        inv_l = pl.reciprocal(l_scr[...], approx=True)   # EUP slot
        o_ref[...] = (acc_scr[...] * inv_l).astype(o_ref.dtype)


def _flash_attention(qh, kh, vh, *, mxu_dtype):
    """qh/kh/vh: (B*H, S, hd) head-major.  Returns causal softmax(q k^T) v of
    shape (B*H, S, hd); the 1/sqrt(hd) scale is already folded into qh."""
    BH, Sq, hd = qh.shape
    _, Sk, _ = kh.shape
    tq_t, tkv_t = _attention_tile_targets()
    tq, tkv = _pick_tile(Sq, tq_t), _pick_tile(Sk, tkv_t)
    assert Sq % tq == 0 and Sk % tkv == 0, "TODO(synk): pad ragged seq lens"
    grid = (BH, Sq // tq, Sk // tkv)

    kernel = functools.partial(_flash_kernel, tq=tq, tkv=tkv,
                               mxu_dtype=mxu_dtype)

    itemsize = jnp.dtype(qh.dtype).itemsize
    cost = pl.CostEstimate(
        flops=int(2 * 2 * BH * Sq * Sk * hd) // 2,     # QK^T + PV, ~halved (causal)
        transcendentals=int(BH * Sq * Sk) // 2,
        bytes_accessed=int((qh.size + kh.size + vh.size + BH * Sq * hd)
                           * itemsize))

    return pl.pallas_call(
        kernel,
        out_shape=jax.ShapeDtypeStruct((BH, Sq, hd), qh.dtype),
        grid_spec=pltpu.PrefetchScalarGridSpec(
            num_scalar_prefetch=0,
            grid=grid,
            in_specs=[
                pl.BlockSpec((None, tq, hd), lambda b, i, j: (b, i, 0)),
                pl.BlockSpec((None, tkv, hd), lambda b, i, j: (b, j, 0)),
                pl.BlockSpec((None, tkv, hd), lambda b, i, j: (b, j, 0)),
            ],
            out_specs=pl.BlockSpec((None, tq, hd), lambda b, i, j: (b, i, 0)),
            scratch_shapes=[
                pltpu.VMEM((tq, 1), jnp.float32),    # running max m
                pltpu.VMEM((tq, 1), jnp.float32),    # running sum l
                pltpu.VMEM((tq, hd), jnp.float32),   # un-normalized output acc
            ]),
        compiler_params=pltpu.CompilerParams(
            dimension_semantics=("parallel", "parallel", "arbitrary"),
            vmem_limit_bytes=_vmem_limit_bytes()),
        cost_estimate=cost,
    )(qh, kh, vh)


# ----------------------------------------------------------------------------
# MultiHeadAttention forward (full mode, causal mask, dropout p=0).
# ----------------------------------------------------------------------------
def multi_head_attention(q, k, v, wq_t, wk_t, wv_t, wo_t, bo, *,
                         num_heads=NUM_HEADS, mxu_dtype=None):
    """q, k, v: (B, S, D).  Weights pre-transposed to (in, out) so x @ W equals
    PyTorch's x @ weight.T.  bo: (D,).  mxu_dtype selects the MXU operand dtype
    (jnp.bfloat16 = fast path on v6e/v7x); stats/accumulation stay f32.
    Returns only the attention output; the module's `cache` is None here."""
    B, S, D = q.shape
    assert k.shape == (B, S, D) and v.shape == (B, S, D)
    H = num_heads
    assert D % H == 0
    hd = D // H
    if mxu_dtype is None:
        mxu_dtype = q.dtype

    # Fold the 1/sqrt(head_dim) softmax scale into the Q projection weight.
    wq_scaled = (wq_t * (hd ** -0.5)).astype(wq_t.dtype)

    q2 = q.reshape(B * S, D)
    if (q is k) and (k is v):
        # Self-attention: single fused QKV GEMM against a (D, 3D) weight.
        w_qkv = jnp.concatenate([wq_scaled, wk_t, wv_t], axis=1)
        qkv = _gemm(q2, w_qkv, mxu_dtype=mxu_dtype)          # (B*S, 3D)
        q_p, k_p, v_p = qkv[:, :D], qkv[:, D:2 * D], qkv[:, 2 * D:]
    else:
        q_p = _gemm(q2, wq_scaled, mxu_dtype=mxu_dtype)
        k_p = _gemm(k.reshape(B * S, D), wk_t, mxu_dtype=mxu_dtype)
        v_p = _gemm(v.reshape(B * S, D), wv_t, mxu_dtype=mxu_dtype)

    # Head-major relayout done by XLA in the wrapper, not inside the kernel.
    def to_heads(x2):
        return (x2.reshape(B, S, H, hd).transpose(0, 2, 1, 3)
                  .reshape(B * H, S, hd))

    ctx = _flash_attention(to_heads(q_p), to_heads(k_p), to_heads(v_p),
                           mxu_dtype=mxu_dtype)              # (B*H, S, hd)

    # Merge heads (XLA) and apply the output projection (+ bias) kernel.
    ctx2 = (ctx.reshape(B, H, S, hd).transpose(0, 2, 1, 3)
               .reshape(B * S, D))
    out2 = _gemm(ctx2, wo_t, bias=bo.reshape(1, D), mxu_dtype=mxu_dtype)
    return out2.reshape(B, S, D)


def reference_mha(q, k, v, wq_t, wk_t, wv_t, wo_t, bo, num_heads):
    """Pure-JAX reference mirroring the PyTorch forward (full, masked, p=0)."""
    B, S, D = q.shape
    hd = D // num_heads
    Q = q @ wq_t
    K = k @ wk_t
    V = v @ wv_t
    Qh = Q.reshape(B, S, num_heads, hd).transpose(0, 2, 1, 3)
    Kh = K.reshape(B, S, num_heads, hd).transpose(0, 2, 1, 3)
    Vh = V.reshape(B, S, num_heads, hd).transpose(0, 2, 1, 3)
    qk = jnp.einsum("bhqd,bhkd->bhqk", Qh, Kh) * (hd ** -0.5)
    mask = jnp.triu(jnp.ones((S, S), jnp.float32), 1) * (-1.0e9)
    qk = qk + mask[None, None]
    p = jax.nn.softmax(qk, axis=-1)
    o = jnp.einsum("bhqk,bhkd->bhqd", p, Vh)
    o = o.transpose(0, 2, 1, 3).reshape(B, S, D)
    return o @ wo_t + bo[None, None, :]


if __name__ == "__main__":
    B, S, D, H = 2, 8, 32, NUM_HEADS
    key = jax.random.PRNGKey(0)
    ks = jax.random.split(key, 8)
    x = jax.random.normal(ks[0], (B, S, D), jnp.float32)
    k_in = jax.random.normal(ks[1], (B, S, D), jnp.float32)
    v_in = jax.random.normal(ks[2], (B, S, D), jnp.float32)

    # Deterministic "nn.Linear"-style weights, already transposed to (in, out).
    wscale = 1.0 / jnp.sqrt(jnp.float32(D))
    wq_t = jax.random.normal(ks[3], (D, D), jnp.float32) * wscale
    wk_t = jax.random.normal(ks[4], (D, D), jnp.float32) * wscale
    wv_t = jax.random.normal(ks[5], (D, D), jnp.float32) * wscale
    wo_t = jax.random.normal(ks[6], (D, D), jnp.float32) * wscale
    bo = jax.random.normal(ks[7], (D,), jnp.float32) * wscale

    # 1) Self-attention (fused QKV projection path), f32 MXU operands.
    out = multi_head_attention(x, x, x, wq_t, wk_t, wv_t, wo_t, bo,
                               num_heads=H)
    out = jax.block_until_ready(out)
    ref = reference_mha(x, x, x, wq_t, wk_t, wv_t, wo_t, bo, H)
    assert out.shape == (B, S, D)
    # 5e-3 tolerance covers the approximate EUP reciprocal in the softmax.
    assert jnp.allclose(out, ref, atol=5e-3, rtol=5e-3), (
        f"self-attn f32 max abs err {jnp.max(jnp.abs(out - ref))}")

    # 2) Same inputs, bf16 MXU operands (fast MXU path on v6e/v7x); tolerance
    #    re-validated (loosened) for bf16 operands per the review.
    out_bf16 = multi_head_attention(x, x, x, wq_t, wk_t, wv_t, wo_t, bo,
                                    num_heads=H, mxu_dtype=jnp.bfloat16)
    out_bf16 = jax.block_until_ready(out_bf16)
    err_bf16 = float(jnp.max(jnp.abs(out_bf16 - ref)))
    assert err_bf16 < 0.25, f"bf16-MXU max abs err {err_bf16}"

    # 3) Distinct q/k/v (separate projection path), f32 MXU operands.
    out_x = multi_head_attention(x, k_in, v_in, wq_t, wk_t, wv_t, wo_t, bo,
                                 num_heads=H)
    out_x = jax.block_until_ready(out_x)
    ref_x = reference_mha(x, k_in, v_in, wq_t, wk_t, wv_t, wo_t, bo, H)
    assert jnp.allclose(out_x, ref_x, atol=5e-3, rtol=5e-3), (
        f"cross-attn f32 max abs err {jnp.max(jnp.abs(out_x - ref_x))}")

    print("KERNEL_OK")
</pallas_src>

<mosaic_0001>
module attributes {stable_mosaic.version = 11 : i64} {
  func.func @_gemm_kernel(%arg0: i32, %arg1: i32, %arg2: i32, %arg3: memref<16x32xf32, #tpu.memory_space<vmem>>, %arg4: memref<32x96xf32, #tpu.memory_space<vmem>>, %arg5: memref<16x96xf32, #tpu.memory_space<vmem>>, %arg6: memref<16x96xf32, #tpu.memory_space<vmem>>) attributes {dimension_semantics = [#tpu.dimension_semantics<parallel>, #tpu.dimension_semantics<parallel>, #tpu.dimension_semantics<arbitrary>], iteration_bounds = array<i64: 1, 1, 1>, scalar_prefetch = 0 : i64, scratch_operands = 1 : i64, tpu.core_type = #tpu.core_type<tc>, window_params = [{transform_indices = @transform_0, window_bounds = array<i64: 16, 32>}, {transform_indices = @transform_1, window_bounds = array<i64: 32, 96>}, {transform_indices = @transform_2, window_bounds = array<i64: 16, 96>}]} {
    %c0_i32 = arith.constant 0 : i32
    %0 = arith.cmpi eq, %arg2, %c0_i32 : i32
    %1 = arith.extui %0 : i1 to i32
    %c0_i32_0 = arith.constant 0 : i32
    %2 = arith.cmpi ne, %1, %c0_i32_0 : i32
    scf.if %2 {
      %cst_10 = arith.constant 0.000000e+00 : f32
      %12 = vector.broadcast %cst_10 : f32 to vector<16x96xf32>
      %c0_11 = arith.constant 0 : index
      %c0_12 = arith.constant 0 : index
      %13 = vector.load %arg6[%c0_11, %c0_12] : memref<16x96xf32, #tpu.memory_space<vmem>>, vector<16x96xf32>
      tpu.vector_store %arg6[%c0_11, %c0_12], %12 {strides = array<i32>} : memref<16x96xf32, #tpu.memory_space<vmem>>, vector<16x96xf32>,
    } else {
    }
    %c0 = arith.constant 0 : index
    %c0_1 = arith.constant 0 : index
    %3 = vector.load %arg6[%c0, %c0_1] : memref<16x96xf32, #tpu.memory_space<vmem>>, vector<16x96xf32>
    %c0_2 = arith.constant 0 : index
    %c0_3 = arith.constant 0 : index
    %4 = vector.load %arg3[%c0_2, %c0_3] : memref<16x32xf32, #tpu.memory_space<vmem>>, vector<16x32xf32>
    %c0_4 = arith.constant 0 : index
    %c0_5 = arith.constant 0 : index
    %5 = vector.load %arg4[%c0_4, %c0_5] : memref<32x96xf32, #tpu.memory_space<vmem>>, vector<32x96xf32>
    %cst = arith.constant dense<0.000000e+00> : vector<16x96xf32>
    %6 = tpu.matmul %4, %5, %cst {dimension_numbers = #tpu.dot_dimension_numbers<[1], [0], [0], [1], [0, 0, 1, 1], [], []>} : vector<16x32xf32>, vector<32x96xf32>, vector<16x96xf32> -> vector<16x96xf32>
    %7 = arith.addf %3, %6 : vector<16x96xf32>
    %c0_6 = arith.constant 0 : index
    %c0_7 = arith.constant 0 : index
    %8 = vector.load %arg6[%c0_6, %c0_7] : memref<16x96xf32, #tpu.memory_space<vmem>>, vector<16x96xf32>
    tpu.vector_store %arg6[%c0_6, %c0_7], %7 {strides = array<i32>} : memref<16x96xf32, #tpu.memory_space<vmem>>, vector<16x96xf32>,
    %c0_i32_8 = arith.constant 0 : i32
    %9 = arith.cmpi eq, %arg2, %c0_i32_8 : i32
    %10 = arith.extui %9 : i1 to i32
    %c0_i32_9 = arith.constant 0 : i32
    %11 = arith.cmpi ne, %10, %c0_i32_9 : i32
    scf.if %11 {
      %c0_10 = arith.constant 0 : index
      %c0_11 = arith.constant 0 : index
      %12 = vector.load %arg6[%c0_10, %c0_11] : memref<16x96xf32, #tpu.memory_space<vmem>>, vector<16x96xf32>
      %c0_12 = arith.constant 0 : index
      %c0_13 = arith.constant 0 : index
      %13 = vector.load %arg5[%c0_12, %c0_13] : memref<16x96xf32, #tpu.memory_space<vmem>>, vector<16x96xf32>
      tpu.vector_store %arg5[%c0_12, %c0_13], %12 {strides = array<i32>} : memref<16x96xf32, #tpu.memory_space<vmem>>, vector<16x96xf32>,
    } else {
    }
    return
  }
  func.func @transform_0(%arg0: i32, %arg1: i32, %arg2: i32) -> (i32, i32) {
    %c0_i32 = arith.constant 0 : i32
    return %arg0, %arg2 : i32, i32
  }
  func.func @transform_1(%arg0: i32, %arg1: i32, %arg2: i32) -> (i32, i32) {
    %c0_i32 = arith.constant 0 : i32
    return %arg2, %arg1 : i32, i32
  }
  func.func @transform_2(%arg0: i32, %arg1: i32, %arg2: i32) -> (i32, i32) {
    %c0_i32 = arith.constant 0 : i32
    return %arg0, %arg1 : i32, i32
  }
}

</mosaic_0001>

<llo_original>
// kernel: tpu_custom_call.1
$region0: #{tpu_custom_call.1}
  #allocation0 [shape = 'u32[]', space=smem, size = 0x4, offset = 0x4, fixed_abs, tag = 'smem constant byte address 0x4 - core index']
  #allocation1 [shape = 'u32[144,128]{1,0:T(1,128)}', space=vmem, size = 0x12000, scoped, tag = 'internal scratch']
  #allocation2 [shape = 'f32[16,96]{1,0:T(8,128)}', space=vmem, size = 0x2000, scoped, tag = 'scratch operand']
  %s0 = inlined_call_operand.hbm [shape: f32[16,32], index: 0, kind: input, shape index: {}]
  %s1 = inlined_call_operand.hbm [shape: f32[32,96], index: 1, kind: input, shape index: {}]
  %s2 = inlined_call_operand.hbm [shape: f32[16,96], index: 2, kind: output, shape index: {}]
  %s3 = sld [smem:[#allocation0]]
  $region34: #{tpu_custom_call.1} parent=0
    _
  %s5 = ssub.s32 1, %s3
  %s6 = scalar_select 0, %s5, %s3
  $region1: #{tpu_custom_call.1} parent=0
    #allocation3 [shape = 'u8[8192]{0}', space=vmem, size = 0x2000, scoped, tag = 'input window, operand 0, single buffered']
    #allocation4 [shape = 's32[1]{0}', space=sflag, size = 0x4, scoped, tag = 'scoped memory for tpu_custom_call.1']
    #allocation5 [shape = 's32[1]{0}', space=sflag, size = 0x4, scoped, tag = 'scoped memory for tpu_custom_call.1']
    #allocation6 [shape = 'u8[16384]{0}', space=vmem, size = 0x4000, scoped, tag = 'input window, operand 1, single buffered']
    #allocation7 [shape = 's32[1]{0}', space=sflag, size = 0x4, scoped, tag = 'scoped memory for tpu_custom_call.1']
    #allocation8 [shape = 'u8[8192]{0}', space=vmem, size = 0x2000, scoped, tag = 'output window, operand 0, single buffered']
    %7 = vsyncpa [#allocation4], 0
    %8 = vsyncpa [#allocation7], 0
    %9 = vsyncpa [#allocation5], 0
    // Predicated region
    $region2: #{tpu_custom_call.1} parent=1 // pred_check
      _
    $region3: #{tpu_custom_call.1} parent=1 // pred_check_branch
      %11 = sbr.rel (0) target = $region5
    $region4: #{tpu_custom_call.1} parent=1 // pred_region
      %s13 = ssub.s32 256, 256
      %14 = vsyncadd [#allocation4], %s13
      %s15 = sshll.u32 [#allocation3], 4
      %s16 = int_to_ptr.vmem [resolvable:$true] %s15
      %21 = dma.hbm_to_vmem [thread:$0]  %s0, 256, %s16, [#allocation4], 128, 128, 8
    $region5: #{tpu_custom_call.1} parent=1 // pred_fallthru
      _
    // Predicated region
    $region6: #{tpu_custom_call.1} parent=1 // pred_check
      _
    $region7: #{tpu_custom_call.1} parent=1 // pred_check_branch
      %23 = sbr.rel (0) target = $region9
    $region8: #{tpu_custom_call.1} parent=1 // pred_region
      %s25 = ssub.s32 512, 512
      %26 = vsyncadd [#allocation7], %s25
      %s27 = sshll.u32 [#allocation6], 4
      %s28 = int_to_ptr.vmem [resolvable:$true] %s27
      %33 = dma.hbm_to_vmem [thread:$0]  %s1, 512, %s28, [#allocation7], 128, 128, 8
    $region9: #{tpu_custom_call.1} parent=1 // pred_fallthru
      _
    // Predicated region
    $region10: #{tpu_custom_call.1} parent=1 // pred_check
      _
    $region11: #{tpu_custom_call.1} parent=1 // pred_check_branch
      %35 = sbr.rel (0) target = $region13
    $region12: #{tpu_custom_call.1} parent=1 // pred_region
      %36 = dma.done [#allocation4], 256
    $region13: #{tpu_custom_call.1} parent=1 // pred_fallthru
      _
    // Predicated region
    $region14: #{tpu_custom_call.1} parent=1 // pred_check
      _
    $region15: #{tpu_custom_call.1} parent=1 // pred_check_branch
      %38 = sbr.rel (0) target = $region17
    $region16: #{tpu_custom_call.1} parent=1 // pred_region
      %39 = dma.done [#allocation7], 512
    $region17: #{tpu_custom_call.1} parent=1 // pred_fallthru
      _
    %p40 = scmp.eq.s32.totalorder 0, 0
    // Predicated region
    $region18: #{tpu_custom_call.1} parent=1 // pred_check
      %p41 = pneg %p40
    $region19: #{tpu_custom_call.1} parent=1 // pred_check_branch
      %43 = sbr.rel (%p41) target = $region21
    $region20: #{tpu_custom_call.1} parent=1 // pred_region
      %vm44 = vcmask 785408
      %45 = vst.msk [vmem:[#allocation2] sm:$0xff] %vm44, 0.0
      %46 = vst.msk [vmem:[#allocation2 + $0x8] sm:$0xff] %vm44, 0.0
    $region21: #{tpu_custom_call.1} parent=1 // pred_fallthru
      _
    %v47 = vld [vmem:[#allocation2] sm:$0xff]
    %v48 = vld [vmem:[#allocation2 + $0x8] sm:$0xff]
    %v49 = vld [vmem:[#allocation3] sm:$0xff]
    %v50 = vld [vmem:[#allocation3 + $0x8] sm:$0xff]
    %v51 = vld [vmem:[#allocation6] sm:$0xff]
    %v52 = vld [vmem:[#allocation6 + $0x8] sm:$0xff]
    %v53 = vld [vmem:[#allocation6 + $0x10] sm:$0xff]
    %v54 = vld [vmem:[#allocation6 + $0x18] sm:$0xff]
    %vm55 = vcmask 261120
    %v57 = vsel %vm55, %v49, 0
    %v60 = vsel %vm55, %v50, 0
    %62 = vmatprep.subr.mxu0 0.0
    %63 = vmatpush1.msra.mxu0 %v51
    %64 = vmatprep.subr.mxu0 0.0
    %65 = vmatpush1.msra.mxu0 %v52
    %66 = vmatprep.subr.mxu0 0.0
    %67 = vmatpush1.msra.mxu0 %v53
    %68 = vmatprep.subr.mxu0 0.0
    %69 = vmatpush1.msra.mxu0 %v54
    %70 = vmatprep.subr.mxu0 0.0
    %71 = vmatpush1.msra.mxu0 0.0
    %72 = vmatprep.subr.mxu0 0.0
    %73 = vmatpush1.msra.mxu0 0.0
    %74 = vmatprep.subr.mxu0 0.0
    %75 = vmatpush1.msra.mxu0 0.0
    %76 = vmatprep.subr.mxu0 0.0
    %77 = vmatpush1.msra.mxu0 0.0
    %78 = vmatprep.subr.mxu0 0.0
    %79 = vmatpush1.msra.mxu0 0.0
    %80 = vmatprep.subr.mxu0 0.0
    %81 = vmatpush1.msra.mxu0 0.0
    %82 = vmatprep.subr.mxu0 0.0
    %83 = vmatpush1.msra.mxu0 0.0
    %84 = vmatprep.subr.mxu0 0.0
    %85 = vmatpush1.msra.mxu0 0.0
    %86 = vmatprep.subr.mxu0 0.0
    %87 = vmatpush1.msra.mxu0 0.0
    %88 = vmatprep.subr.mxu0 0.0
    %89 = vmatpush1.msra.mxu0 0.0
    %90 = vmatprep.subr.mxu0 0.0
    %91 = vmatpush1.msra.mxu0 0.0
    %92 = vmatprep.subr.mxu0 0.0
    %93 = vmatpush1.msra.mxu0 0.0
    %94 = vmatprep.subr.mxu0 0.0
    %95 = vmatpush1.msra.mxu0 0.0
    %96 = vmatprep.subr.mxu0 0.0
    %97 = vmatpush1.msra.mxu0 0.0
    %98 = vmatprep.subr.mxu0 0.0
    %99 = vmatpush1.msra.mxu0 0.0
    %100 = vmatprep.subr.mxu0 0.0
    %101 = vmatpush1.msra.mxu0 0.0
    %102 = vmatprep.subr.mxu0 0.0
    %103 = vmatpush1.msra.mxu0 0.0
    %104 = vmatprep.subr.mxu0 0.0
    %105 = vmatpush1.msra.mxu0 0.0
    %106 = vmatprep.subr.mxu0 0.0
    %107 = vmatpush1.msra.mxu0 0.0
    %108 = vmatprep.subr.mxu0 0.0
    %109 = vmatpush1.msra.mxu0 0.0
    %110 = vmatprep.subr.mxu0 0.0
    %111 = vmatpush1.msra.mxu0 0.0
    %112 = vmatprep.subr.mxu0 0.0
    %113 = vmatpush1.msra.mxu0 0.0
    %114 = vmatprep.subr.mxu0 0.0
    %115 = vmatpush1.msra.mxu0 0.0
    %116 = vmatprep.subr.mxu0 0.0
    %117 = vmatpush1.msra.mxu0 0.0
    %118 = vmatprep.subr.mxu0 0.0
    %119 = vmatpush1.msra.mxu0 0.0
    %120 = vmatprep.subr.mxu0 0.0
    %121 = vmatpush1.msra.mxu0 0.0
    %122 = vmatprep.subr.mxu0 0.0
    %123 = vmatpush1.msra.mxu0 0.0
    %124 = vmatprep.subr.mxu0 0.0
    %125 = vmatpush1.msra.mxu0 0.0
    %126 = vmatprep.mubr.f32.mxu0 0.0
    %127 = vmatmul.mubr.f32.gmra.mrb[0].mxu0 %v57
    %v128 = vpop.f32.mrb[0].mxu0
    %v129 = vadd.f32 0.0, %v128
    %v130 = vpop.f32.mrb[0].mxu0
    %131 = vmatprep.mubr.f32.mxu0 0.0
    %132 = vmatmul.mubr.f32.gmra.mrb[0].mxu0 %v60
    %v133 = vpop.f32.mrb[0].mxu0
    %v134 = vadd.f32 0.0, %v133
    %v135 = vpop.f32.mrb[0].mxu0
    %136 = vdwg.mxu0
    %v137 = vadd.f32 %v47, %v129
    %v138 = vadd.f32 %v48, %v134
    %vm139 = vcmask 785408
    %140 = vst.msk [vmem:[#allocation2] sm:$0xff] %vm139, %v137
    %141 = vst.msk [vmem:[#allocation2 + $0x8] sm:$0xff] %vm139, %v138
    // Predicated region
    $region22: #{tpu_custom_call.1} parent=1 // pred_check
      %p142 = pneg %p40
    $region23: #{tpu_custom_call.1} parent=1 // pred_check_branch
      %144 = sbr.rel (%p142) target = $region25
    $region24: #{tpu_custom_call.1} parent=1 // pred_region
      %v145 = vld [vmem:[#allocation2] sm:$0xff]
      %v146 = vld [vmem:[#allocation2 + $0x8] sm:$0xff]
      %147 = vst.msk [vmem:[#allocation8] sm:$0xff] %vm139, %v145
      %148 = vst.msk [vmem:[#allocation8 + $0x8] sm:$0xff] %vm139, %v146
    $region25: #{tpu_custom_call.1} parent=1 // pred_fallthru
      _
    // Predicated region
    $region26: #{tpu_custom_call.1} parent=1 // pred_check
      _
    $region27: #{tpu_custom_call.1} parent=1 // pred_check_branch
      %150 = sbr.rel (0) target = $region29
    $region28: #{tpu_custom_call.1} parent=1 // pred_region
      %s152 = ssub.s32 256, 256
      %153 = vsyncadd [#allocation5], %s152
      %s154 = sshll.u32 [#allocation8], 4
      %s155 = int_to_ptr.vmem [resolvable:$true] %s154
      %160 = dma.vmem_to_hbm [thread:$0]  %s155, 256, %s2, [#allocation5], 128, 128, 8
    $region29: #{tpu_custom_call.1} parent=1 // pred_fallthru
      _
    // Predicated region
    $region30: #{tpu_custom_call.1} parent=1 // pred_check
      _
    $region31: #{tpu_custom_call.1} parent=1 // pred_check_branch
      %162 = sbr.rel (0) target = $region33
    $region32: #{tpu_custom_call.1} parent=1 // pred_region
      %163 = dma.done [#allocation5], 256
    $region33: #{tpu_custom_call.1} parent=1 // pred_fallthru
      _
    %164 = vsyncpa [#allocation4], 1
    %165 = vsyncpa [#allocation7], 1
    %166 = vsyncpa [#allocation5], 1

</llo_original>
